<compile_context>
chip_gen: v7x
topology: tpu7x:2x2x1
jax: 0.10.0
libtpu: 0.0.40
codegen_flags: <defaults>
</compile_context>

<pallas_src>
import jax
import jax.numpy as jnp
from jax.experimental import pallas as pl
from jax.experimental.pallas import tpu as pltpu


def _vmem_limit_bytes():
    """Explicit scoped-VMEM limit: ~3/4 of physical capacity, with a safe
    fallback if the hardware query is unavailable."""
    try:
        cap = pltpu.get_tpu_info().vmem_capacity_bytes
    except Exception:
        cap = 64 * 1024 * 1024
    return int(cap * 3 // 4)


def _pick_c_tile(c_out: int) -> int:
    # 128 matches the MXU width; ragged last tiles are handled by masked writes.
    return c_out if c_out <= 128 else 128


def _pick_l_tile(l_out: int) -> int:
    # Full length for small sequences, otherwise a 128-multiple tile that bounds
    # the f32 accumulator / im2col scratch.
    return l_out if l_out <= 2048 else 2048


def fused_conv1d(x, w, scale, shift, *, dilation=1, padding=0, apply_relu=True,
                 residual=None, down_w=None, down_b=None, out_dtype=None):
    """Fused dilated Conv1d (stride=1) + folded per-channel affine (+ ReLU)
    (+ fused residual add / 1x1 down-sample + final ReLU) as one pallas_call.

    x        : (N, C_in, L)
    w        : (C_out, C_in, K)
    scale    : (C_out,)  folded BatchNorm scale (or ones)
    shift    : (C_out,)  folded conv-bias + BatchNorm shift (or plain bias)
    residual : optional residual-branch tensor of length L_out.
               - down_w is None : shape (N, C_out, L_out), added directly.
               - down_w given   : shape (N, C_down_in, L_out); the kernel
                 computes down_w @ residual + down_b and adds it.
    returns  : (N, C_out, L_out), L_out = L + 2*padding - dilation*(K-1)
    """
    n, c_in, l = x.shape
    c_out, c_in_w, k = w.shape
    assert c_in_w == c_in
    l_out = l + 2 * padding - dilation * (k - 1)
    assert l_out > 0
    out_dtype = out_dtype if out_dtype is not None else x.dtype
    bf16 = jnp.bfloat16

    # Weights flattened to (C_out, K*C_in) so the kernel does ONE deep MXU
    # contraction per C_out tile; bf16 is the native MXU operand dtype.
    w_flat = jnp.transpose(w, (0, 2, 1)).reshape(c_out, k * c_in).astype(bf16)
    scale2 = scale.reshape(c_out, 1).astype(jnp.float32)
    shift2 = shift.reshape(c_out, 1).astype(jnp.float32)

    c_tile = _pick_c_tile(c_out)
    l_tile = _pick_l_tile(l_out)
    n_ct = pl.cdiv(c_out, c_tile)
    n_lt = pl.cdiv(l_out, l_tile)

    has_res = residual is not None
    has_down = down_w is not None
    if has_down:
        assert has_res
        c_res_in = down_w.shape[1]
        assert residual.shape == (n, c_res_in, l_out)
        dw_flat = down_w.reshape(c_out, c_res_in).astype(bf16)
        db2 = down_b.reshape(c_out, 1).astype(jnp.float32)
    elif has_res:
        assert residual.shape == (n, c_out, l_out)

    # Zero-haloed input scratch length; covers every (l-tile, tap) slice even
    # when l_tile does not divide l_out.  (>= l + 2*padding)
    xpad_len = n_lt * l_tile + dilation * (k - 1)

    def kernel(*refs):
        if has_down:
            (x_ref, w_ref, s_ref, b_ref, r_ref, dw_ref, db_ref,
             o_ref, xpad_ref, col_ref) = refs
        elif has_res:
            x_ref, w_ref, s_ref, b_ref, r_ref, o_ref, xpad_ref, col_ref = refs
        else:
            x_ref, w_ref, s_ref, b_ref, o_ref, xpad_ref, col_ref = refs

        li = pl.program_id(1)
        ci = pl.program_id(2)

        # Once per batch element: zero-haloed bf16 copy of the input row block.
        # Replaces the wrapper-side jnp.pad HBM round trips.
        @pl.when(jnp.logical_and(li == 0, ci == 0))
        def _fill_xpad():
            if padding > 0:
                xpad_ref[:, :padding] = jnp.zeros((c_in, padding), bf16)
            tail = xpad_len - (padding + l)
            if tail > 0:
                xpad_ref[:, padding + l:] = jnp.zeros((c_in, tail), bf16)
            xpad_ref[:, padding:padding + l] = x_ref[0].astype(bf16)

        # Once per (batch, L-tile): im2col slab (K*C_in, l_tile).  The K
        # unaligned shift copies are hoisted out of the C_out-tile loop and the
        # MXU gets one K*C_in-deep contraction instead of K shallow ones.
        @pl.when(ci == 0)
        def _fill_im2col():
            for kk in range(k):
                if n_lt == 1:
                    sl = xpad_ref[:, kk * dilation: kk * dilation + l_tile]
                else:
                    start = pl.multiple_of(li * l_tile, l_tile) + kk * dilation
                    sl = xpad_ref[:, pl.ds(start, l_tile)]
                col_ref[kk * c_in:(kk + 1) * c_in, :] = sl

        # Single deep matmul: bf16 operands, f32 accumulation.
        acc = jnp.dot(w_ref[...], col_ref[...],
                      preferred_element_type=jnp.float32)
        y = acc * s_ref[...] + b_ref[...]          # folded conv-bias + BatchNorm
        if apply_relu:
            y = jnp.maximum(y, 0.0)
        if has_down:                               # fused 1x1 down-sample + add
            res = jnp.dot(dw_ref[...], r_ref[0].astype(bf16),
                          preferred_element_type=jnp.float32) + db_ref[...]
            y = jnp.maximum(y + res, 0.0)
        elif has_res:                              # identity residual + final ReLU
            y = jnp.maximum(y + r_ref[0].astype(jnp.float32), 0.0)
        o_ref[0] = y.astype(o_ref.dtype)

    in_specs = [
        pl.BlockSpec((1, c_in, l), lambda ni, li, ci: (ni, 0, 0)),
        pl.BlockSpec((c_tile, k * c_in), lambda ni, li, ci: (ci, 0)),
        pl.BlockSpec((c_tile, 1), lambda ni, li, ci: (ci, 0)),
        pl.BlockSpec((c_tile, 1), lambda ni, li, ci: (ci, 0)),
    ]
    args = [x, w_flat, scale2, shift2]
    if has_down:
        in_specs.append(pl.BlockSpec((1, c_res_in, l_tile),
                                     lambda ni, li, ci: (ni, 0, li)))
        args.append(residual)
        in_specs.append(pl.BlockSpec((c_tile, c_res_in),
                                     lambda ni, li, ci: (ci, 0)))
        in_specs.append(pl.BlockSpec((c_tile, 1), lambda ni, li, ci: (ci, 0)))
        args += [dw_flat, db2]
    elif has_res:
        in_specs.append(pl.BlockSpec((1, c_tile, l_tile),
                                     lambda ni, li, ci: (ni, ci, li)))
        args.append(residual)

    return pl.pallas_call(
        kernel,
        out_shape=jax.ShapeDtypeStruct((n, c_out, l_out), out_dtype),
        grid_spec=pltpu.PrefetchScalarGridSpec(
            num_scalar_prefetch=0,
            grid=(n, n_lt, n_ct),
            in_specs=in_specs,
            out_specs=pl.BlockSpec((1, c_tile, l_tile),
                                   lambda ni, li, ci: (ni, ci, li)),
            scratch_shapes=[
                pltpu.VMEM((c_in, xpad_len), bf16),        # zero-haloed input
                pltpu.VMEM((k * c_in, l_tile), bf16),      # im2col slab
            ]),
        compiler_params=pltpu.CompilerParams(
            dimension_semantics=("parallel", "arbitrary", "arbitrary"),
            vmem_limit_bytes=_vmem_limit_bytes()),
    )(*args)


def temporal_block_forward(x, params, *, kernel_size, stride, dilation,
                           padding, eps=1e-5):
    """Inference-mode forward of the PyTorch TemporalBlock (dropout = identity,
    BatchNorm uses running statistics)."""
    assert stride == 1  # TODO(synk): general stride not implemented.
    del kernel_size     # implied by the weight shapes

    def bn_affine(gamma, beta, mean, var, conv_bias):
        s = gamma * jax.lax.rsqrt(var + eps)
        return s, s * (conv_bias - mean) + beta

    # conv1 + bn1 + relu1 (dropout1 identity).  Intermediate kept in bf16.
    s1, b1 = bn_affine(params["bn1_gamma"], params["bn1_beta"],
                       params["bn1_mean"], params["bn1_var"],
                       params["conv1_b"])
    h = fused_conv1d(x, params["conv1_w"], s1, b1,
                     dilation=dilation, padding=padding, apply_relu=True,
                     out_dtype=jnp.bfloat16)

    # conv2 + bn2 + relu2 (dropout2 identity), with the residual branch
    # (identity or fused 1x1 down-sample) and the final ReLU in the epilogue.
    s2, b2 = bn_affine(params["bn2_gamma"], params["bn2_beta"],
                       params["bn2_mean"], params["bn2_var"],
                       params["conv2_b"])
    if params.get("down_w") is not None:
        out = fused_conv1d(h, params["conv2_w"], s2, b2,
                           dilation=dilation, padding=padding, apply_relu=True,
                           residual=x, down_w=params["down_w"],
                           down_b=params["down_b"], out_dtype=x.dtype)
    else:
        out = fused_conv1d(h, params["conv2_w"], s2, b2,
                           dilation=dilation, padding=padding, apply_relu=True,
                           residual=x, out_dtype=x.dtype)
    return out


def _ref_forward(x, params, *, stride, dilation, padding, eps=1e-5):
    """Pure-JAX/XLA f32 reference (same eval-mode semantics)."""
    prec = jax.lax.Precision.HIGHEST

    def conv1d(xx, w, b, pad, dil):
        y = jax.lax.conv_general_dilated(
            xx, w, window_strides=(stride,), padding=[(pad, pad)],
            rhs_dilation=(dil,), dimension_numbers=("NCH", "OIH", "NCH"),
            precision=prec)
        return y + b[None, :, None]

    def bn(xx, g, bta, m, v):
        return (g[None, :, None] * (xx - m[None, :, None])
                * jax.lax.rsqrt(v[None, :, None] + eps) + bta[None, :, None])

    h = jax.nn.relu(bn(conv1d(x, params["conv1_w"], params["conv1_b"],
                              padding, dilation),
                       params["bn1_gamma"], params["bn1_beta"],
                       params["bn1_mean"], params["bn1_var"]))
    h = jax.nn.relu(bn(conv1d(h, params["conv2_w"], params["conv2_b"],
                              padding, dilation),
                       params["bn2_gamma"], params["bn2_beta"],
                       params["bn2_mean"], params["bn2_var"]))
    if params.get("down_w") is not None:
        res = conv1d(x, params["down_w"], params["down_b"], 0, 1)
    else:
        res = x
    return jax.nn.relu(h + res)


if __name__ == "__main__":
    f32 = jnp.float32

    def make_params(key, c_in, c_out, k, with_down):
        ks = jax.random.split(key, 16)
        p = {
            "conv1_w": 0.3 * jax.random.normal(ks[0], (c_out, c_in, k), f32),
            "conv1_b": 0.1 * jax.random.normal(ks[1], (c_out,), f32),
            "bn1_gamma": 1.0 + 0.1 * jax.random.normal(ks[2], (c_out,), f32),
            "bn1_beta": 0.1 * jax.random.normal(ks[3], (c_out,), f32),
            "bn1_mean": 0.1 * jax.random.normal(ks[4], (c_out,), f32),
            "bn1_var": 1.0 + 0.1 * jnp.abs(jax.random.normal(ks[5], (c_out,), f32)),
            "conv2_w": 0.3 * jax.random.normal(ks[6], (c_out, c_out, k), f32),
            "conv2_b": 0.1 * jax.random.normal(ks[7], (c_out,), f32),
            "bn2_gamma": 1.0 + 0.1 * jax.random.normal(ks[8], (c_out,), f32),
            "bn2_beta": 0.1 * jax.random.normal(ks[9], (c_out,), f32),
            "bn2_mean": 0.1 * jax.random.normal(ks[10], (c_out,), f32),
            "bn2_var": 1.0 + 0.1 * jnp.abs(jax.random.normal(ks[11], (c_out,), f32)),
            "down_w": (0.01 * jax.random.normal(ks[12], (c_out, c_in, 1), f32)
                       if with_down else None),
            "down_b": (0.1 * jax.random.normal(ks[13], (c_out,), f32)
                       if with_down else None),
        }
        return p

    key = jax.random.PRNGKey(0)
    k_a, k_b, k_xa, k_xb = jax.random.split(key, 4)
    # bf16 MXU operands + bf16 intermediate -> compare to the f32 reference
    # with a bf16-appropriate tolerance.
    RTOL = ATOL = 5e-2

    # Case A: n_inputs != n_outputs -> fused 1x1 down-sample on the residual.
    # 2*padding == dilation*(K-1) so the residual add is length-preserving.
    N, C_IN, C_OUT, L, K, DIL, PAD = 2, 4, 8, 16, 3, 1, 1
    params_a = make_params(k_a, C_IN, C_OUT, K, with_down=True)
    x_a = jax.random.normal(k_xa, (N, C_IN, L), f32)
    out_a = jax.block_until_ready(
        temporal_block_forward(x_a, params_a, kernel_size=K, stride=1,
                               dilation=DIL, padding=PAD))
    ref_a = _ref_forward(x_a, params_a, stride=1, dilation=DIL, padding=PAD)
    assert out_a.shape == (N, C_OUT, L), out_a.shape
    assert out_a.dtype == x_a.dtype
    err_a = float(jnp.max(jnp.abs(out_a - ref_a)))
    assert jnp.allclose(out_a, ref_a, rtol=RTOL, atol=ATOL), err_a

    # Case B: n_inputs == n_outputs -> identity residual, dilation 2.
    C, K2, DIL2, PAD2 = 8, 3, 2, 2
    params_b = make_params(k_b, C, C, K2, with_down=False)
    x_b = jax.random.normal(k_xb, (N, C, L), f32)
    out_b = jax.block_until_ready(
        temporal_block_forward(x_b, params_b, kernel_size=K2, stride=1,
                               dilation=DIL2, padding=PAD2))
    ref_b = _ref_forward(x_b, params_b, stride=1, dilation=DIL2, padding=PAD2)
    assert out_b.shape == (N, C, L), out_b.shape
    err_b = float(jnp.max(jnp.abs(out_b - ref_b)))
    assert jnp.allclose(out_b, ref_b, rtol=RTOL, atol=ATOL), err_b

    print("KERNEL_OK")
</pallas_src>

<mosaic_0001>
module attributes {stable_mosaic.version = 11 : i64} {
  func.func @kernel(%arg0: i32, %arg1: i32, %arg2: i32, %arg3: memref<1x4x16xf32, #tpu.memory_space<vmem>>, %arg4: memref<8x12xbf16, #tpu.memory_space<vmem>>, %arg5: memref<8x1xf32, #tpu.memory_space<vmem>>, %arg6: memref<8x1xf32, #tpu.memory_space<vmem>>, %arg7: memref<1x8x16xbf16, #tpu.memory_space<vmem>>, %arg8: memref<4x18xbf16, #tpu.memory_space<vmem>>, %arg9: memref<12x16xbf16, #tpu.memory_space<vmem>>) attributes {dimension_semantics = [#tpu.dimension_semantics<parallel>, #tpu.dimension_semantics<arbitrary>, #tpu.dimension_semantics<arbitrary>], iteration_bounds = array<i64: 2, 1, 1>, scalar_prefetch = 0 : i64, scratch_operands = 2 : i64, tpu.core_type = #tpu.core_type<tc>, window_params = [{transform_indices = @transform_0, window_bounds = array<i64: 1, 4, 16>}, {transform_indices = @transform_1, window_bounds = array<i64: 8, 12>}, {transform_indices = @transform_2, window_bounds = array<i64: 8, 1>}, {transform_indices = @transform_3, window_bounds = array<i64: 8, 1>}, {transform_indices = @transform_4, window_bounds = array<i64: 1, 8, 16>}]} {
    %c0_i32 = arith.constant 0 : i32
    %0 = arith.cmpi eq, %arg1, %c0_i32 : i32
    %c0_i32_0 = arith.constant 0 : i32
    %1 = arith.cmpi eq, %arg2, %c0_i32_0 : i32
    %2 = arith.andi %0, %1 : i1
    %3 = arith.extui %2 : i1 to i32
    %c0_i32_1 = arith.constant 0 : i32
    %4 = arith.cmpi ne, %3, %c0_i32_1 : i32
    scf.if %4 {
      %cst_15 = arith.constant 0.000000e+00 : bf16
      %23 = vector.broadcast %cst_15 : bf16 to vector<4x1xbf16>
      %c0_16 = arith.constant 0 : index
      %c0_17 = arith.constant 0 : index
      %24 = vector.load %arg8[%c0_16, %c0_17] : memref<4x18xbf16, #tpu.memory_space<vmem>>, vector<4x1xbf16>
      tpu.vector_store %arg8[%c0_16, %c0_17], %23 {strides = array<i32>} : memref<4x18xbf16, #tpu.memory_space<vmem>>, vector<4x1xbf16>,
      %cst_18 = arith.constant 0.000000e+00 : bf16
      %25 = vector.broadcast %cst_18 : bf16 to vector<4x1xbf16>
      %c0_19 = arith.constant 0 : index
      %c17 = arith.constant 17 : index
      %26 = vector.load %arg8[%c0_19, %c17] : memref<4x18xbf16, #tpu.memory_space<vmem>>, vector<4x1xbf16>
      tpu.vector_store %arg8[%c0_19, %c17], %25 {strides = array<i32>} : memref<4x18xbf16, #tpu.memory_space<vmem>>, vector<4x1xbf16>,
      %c0_20 = arith.constant 0 : index
      %c0_21 = arith.constant 0 : index
      %c0_22 = arith.constant 0 : index
      %27 = vector.load %arg3[%c0_20, %c0_21, %c0_22] : memref<1x4x16xf32, #tpu.memory_space<vmem>>, vector<1x4x16xf32>
      %28 = vector.shape_cast %27 : vector<1x4x16xf32> to vector<4x16xf32>
      %29 = arith.truncf %28 : vector<4x16xf32> to vector<4x16xbf16>
      %c0_23 = arith.constant 0 : index
      %c1 = arith.constant 1 : index
      %30 = vector.load %arg8[%c0_23, %c1] : memref<4x18xbf16, #tpu.memory_space<vmem>>, vector<4x16xbf16>
      tpu.vector_store %arg8[%c0_23, %c1], %29 {strides = array<i32>} : memref<4x18xbf16, #tpu.memory_space<vmem>>, vector<4x16xbf16>,
    } else {
    }
    %c0_i32_2 = arith.constant 0 : i32
    %5 = arith.cmpi eq, %arg2, %c0_i32_2 : i32
    %6 = arith.extui %5 : i1 to i32
    %c0_i32_3 = arith.constant 0 : i32
    %7 = arith.cmpi ne, %6, %c0_i32_3 : i32
    scf.if %7 {
      %c0_15 = arith.constant 0 : index
      %c0_16 = arith.constant 0 : index
      %23 = vector.load %arg8[%c0_15, %c0_16] : memref<4x18xbf16, #tpu.memory_space<vmem>>, vector<4x16xbf16>
      %c0_17 = arith.constant 0 : index
      %c0_18 = arith.constant 0 : index
      %24 = vector.load %arg9[%c0_17, %c0_18] : memref<12x16xbf16, #tpu.memory_space<vmem>>, vector<4x16xbf16>
      tpu.vector_store %arg9[%c0_17, %c0_18], %23 {strides = array<i32>} : memref<12x16xbf16, #tpu.memory_space<vmem>>, vector<4x16xbf16>,
      %c0_19 = arith.constant 0 : index
      %c1 = arith.constant 1 : index
      %25 = vector.load %arg8[%c0_19, %c1] : memref<4x18xbf16, #tpu.memory_space<vmem>>, vector<4x16xbf16>
      %c4 = arith.constant 4 : index
      %c0_20 = arith.constant 0 : index
      %26 = vector.load %arg9[%c4, %c0_20] : memref<12x16xbf16, #tpu.memory_space<vmem>>, vector<4x16xbf16>
      tpu.vector_store %arg9[%c4, %c0_20], %25 {strides = array<i32>} : memref<12x16xbf16, #tpu.memory_space<vmem>>, vector<4x16xbf16>,
      %c0_21 = arith.constant 0 : index
      %c2 = arith.constant 2 : index
      %27 = vector.load %arg8[%c0_21, %c2] : memref<4x18xbf16, #tpu.memory_space<vmem>>, vector<4x16xbf16>
      %c8 = arith.constant 8 : index
      %c0_22 = arith.constant 0 : index
      %28 = vector.load %arg9[%c8, %c0_22] : memref<12x16xbf16, #tpu.memory_space<vmem>>, vector<4x16xbf16>
      tpu.vector_store %arg9[%c8, %c0_22], %27 {strides = array<i32>} : memref<12x16xbf16, #tpu.memory_space<vmem>>, vector<4x16xbf16>,
    } else {
    }
    %c0 = arith.constant 0 : index
    %c0_4 = arith.constant 0 : index
    %8 = vector.load %arg4[%c0, %c0_4] : memref<8x12xbf16, #tpu.memory_space<vmem>>, vector<8x12xbf16>
    %c0_5 = arith.constant 0 : index
    %c0_6 = arith.constant 0 : index
    %9 = vector.load %arg9[%c0_5, %c0_6] : memref<12x16xbf16, #tpu.memory_space<vmem>>, vector<12x16xbf16>
    %cst = arith.constant dense<0.000000e+00> : vector<8x16xf32>
    %10 = tpu.matmul %8, %9, %cst {dimension_numbers = #tpu.dot_dimension_numbers<[1], [0], [0], [1], [0, 0, 1, 1], [], []>} : vector<8x12xbf16>, vector<12x16xbf16>, vector<8x16xf32> -> vector<8x16xf32>
    %c0_7 = arith.constant 0 : index
    %c0_8 = arith.constant 0 : index
    %11 = vector.load %arg5[%c0_7, %c0_8] : memref<8x1xf32, #tpu.memory_space<vmem>>, vector<8x1xf32>
    %12 = vector.broadcast %11 : vector<8x1xf32> to vector<8x16xf32>
    %13 = arith.mulf %10, %12 : vector<8x16xf32>
    %c0_9 = arith.constant 0 : index
    %c0_10 = arith.constant 0 : index
    %14 = vector.load %arg6[%c0_9, %c0_10] : memref<8x1xf32, #tpu.memory_space<vmem>>, vector<8x1xf32>
    %15 = vector.broadcast %14 : vector<8x1xf32> to vector<8x16xf32>
    %16 = arith.addf %13, %15 : vector<8x16xf32>
    %cst_11 = arith.constant 0.000000e+00 : f32
    %17 = vector.broadcast %cst_11 : f32 to vector<8x16xf32>
    %18 = arith.maximumf %16, %17 : vector<8x16xf32>
    %19 = arith.truncf %18 : vector<8x16xf32> to vector<8x16xbf16>
    %c0_12 = arith.constant 0 : index
    %c0_13 = arith.constant 0 : index
    %c0_14 = arith.constant 0 : index
    %20 = vector.load %arg7[%c0_12, %c0_13, %c0_14] : memref<1x8x16xbf16, #tpu.memory_space<vmem>>, vector<1x8x16xbf16>
    %21 = vector.shape_cast %20 : vector<1x8x16xbf16> to vector<8x16xbf16>
    %22 = vector.shape_cast %19 : vector<8x16xbf16> to vector<1x8x16xbf16>
    tpu.vector_store %arg7[%c0_12, %c0_13, %c0_14], %22 {strides = array<i32>} : memref<1x8x16xbf16, #tpu.memory_space<vmem>>, vector<1x8x16xbf16>,
    return
  }
  func.func @transform_0(%arg0: i32, %arg1: i32, %arg2: i32) -> (i32, i32, i32) {
    %c0_i32 = arith.constant 0 : i32
    %c0_i32_0 = arith.constant 0 : i32
    %c0_i32_1 = arith.constant 0 : i32
    return %arg0, %c0_i32, %c0_i32_0 : i32, i32, i32
  }
  func.func @transform_1(%arg0: i32, %arg1: i32, %arg2: i32) -> (i32, i32) {
    %c0_i32 = arith.constant 0 : i32
    %c0_i32_0 = arith.constant 0 : i32
    return %arg2, %c0_i32 : i32, i32
  }
  func.func @transform_2(%arg0: i32, %arg1: i32, %arg2: i32) -> (i32, i32) {
    %c0_i32 = arith.constant 0 : i32
    %c0_i32_0 = arith.constant 0 : i32
    return %arg2, %c0_i32 : i32, i32
  }
  func.func @transform_3(%arg0: i32, %arg1: i32, %arg2: i32) -> (i32, i32) {
    %c0_i32 = arith.constant 0 : i32
    %c0_i32_0 = arith.constant 0 : i32
    return %arg2, %c0_i32 : i32, i32
  }
  func.func @transform_4(%arg0: i32, %arg1: i32, %arg2: i32) -> (i32, i32, i32) {
    %c0_i32 = arith.constant 0 : i32
    return %arg0, %arg2, %arg1 : i32, i32, i32
  }
}

</mosaic_0001>

<llo_original>
// kernel: tpu_custom_call.1
$region0: #{tpu_custom_call.1}
  #allocation0 [shape = 'u32[]', space=smem, size = 0x4, offset = 0x4, fixed_abs, tag = 'smem constant byte address 0x4 - core index']
  #allocation1 [shape = 'u32[144,128]{1,0:T(1,128)}', space=vmem, size = 0x12000, scoped, tag = 'internal scratch']
  #allocation2 [shape = 'bf16[4,18]{1,0:T(4,128)(2,1)}', space=vmem, size = 0x400, scoped, tag = 'scratch operand']
  #allocation3 [shape = 'bf16[12,16]{1,0:T(8,128)(2,1)}', space=vmem, size = 0x1000, scoped, tag = 'scratch operand']
  %s0 = inlined_call_operand.vmem [shape: f32[2,4,16], index: 0, kind: input, shape index: {}]
  %s1 = inlined_call_operand.vmem [shape: bf16[8,12], index: 1, kind: input, shape index: {}]
  %s2 = inlined_call_operand.vmem [shape: f32[8,1], index: 2, kind: input, shape index: {}]
  %s3 = inlined_call_operand.vmem [shape: f32[8,1], index: 3, kind: input, shape index: {}]
  %s4 = inlined_call_operand.hbm [shape: bf16[2,8,16], index: 4, kind: output, shape index: {}]
  %s5 = sld [smem:[#allocation0]]
  $region57: #{tpu_custom_call.1} parent=0
    _
  %s7 = ssub.s32 1, %s5
  %s8 = scalar_select 0, %s7, %s5
  $region1: #{tpu_custom_call.1} parent=0
    #allocation4 [shape = 'u8[4096]{0}', space=vmem, size = 0x1000, scoped, tag = 'output window, operand 0']
    #allocation5 [shape = 's32[2]{0}', space=sflag, size = 0x8, scoped, tag = 'scoped memory for tpu_custom_call.1']
    %9 = vsyncpa [#allocation5], 0
    %s10 = scalar_lea.sflag [#allocation5], 1
    %11 = vsyncpa %s10, 0
    loop: start=0, step=1, limit=4
    $region2: #{tpu_custom_call.1} parent=1 // loop_pre_header
      _
    $region3: #{tpu_custom_call.1} parent=1 // loop_header
      %s13 = sphi 0, %s17
      %p14 = scmp.ge.s32.totalorder %s13, 4
      %s20 = sphi 0, %s39
      %s21 = sphi 0, %s35
      %s22 = sphi 0, %s31
      %s23 = sphi 0, %s20
      %s24 = sphi 0, %s21
      %s25 = sphi 0, %s22
      %s26 = sphi 0, %s23
      %s27 = sphi 0, %s24
      %s28 = sphi 0, %s25
      %s42 = sphi 0, %s44
      %s45 = sphi 0, %s42
      %s46 = sphi 0, %s45
      %s62 = sphi 0, %s46
      %s68 = sphi 0, %s70
      %s71 = sphi 0, %s68
      %s72 = sphi 0, %s71
      %s88 = sphi 0, %s72
      %s94 = sphi 0, %s96
      %s97 = sphi 0, %s94
      %s98 = sphi 0, %s97
      %s114 = sphi 0, %s98
      %s120 = sphi 0, %s122
      %s123 = sphi 0, %s120
      %s124 = sphi 0, %s123
      %s140 = sphi 0, %s124
      %s150 = sphi 0, %s152
      %s153 = sphi 0, %s150
      %s154 = sphi 0, %s153
      %s170 = sphi 0, %s154
    $region4: #{tpu_custom_call.1} parent=1 // loop_header_branch
      %16 = sbr.rel (%p14) target = $region8
    $region5: #{tpu_custom_call.1} parent=1 // loop_body
      %s18 = ssub.s32 %s13, 1
      %s19 = ssub.s32 %s13, 2
      %s29 = sadd.s32 1, %s22
      %p30 = scmp.ge.s32.totalorder %s29, 1
      %s31 = scalar_select %p30, 0, %s29
      %s32 = sadd.s32 1, %s21
      %s33 = scalar_select %p30, %s32, %s21
      %p34 = scmp.ge.s32.totalorder %s33, 1
      %s35 = scalar_select %p34, 0, %s33
      %s36 = sadd.s32 1, %s20
      %s37 = scalar_select %p34, %s36, %s20
      %p38 = scmp.ge.s32.totalorder %s37, 2
      %s39 = scalar_select %p38, 0, %s37
      %s40 = ssub.s32 %s20, %s39
      %p41 = scmp.eq.s32.totalorder %s40, 0
      %s43 = sadd.s32 %s42, 1
      %s44 = scalar_select %p41, %s42, %s43
      %p47 = pneg %p41
      %p48 = scmp.eq.s32.totalorder %s13, 1
      %p49 = por %p47, %p48
      %p50 = scmp.ne.s32.totalorder %s42, %s45
      %p51 = scmp.eq.s32.totalorder %s13, 0
      %p52 = por %p50, %p51
      %p53 = scmp.ne.s32.totalorder %s42, %s45
      %p54 = scmp.eq.s32.totalorder %s18, 1
      %p55 = por %p53, %p54
      %p56 = scmp.ne.s32.totalorder %s45, %s46
      %p57 = scmp.eq.s32.totalorder %s18, 0
      %p58 = por %p56, %p57
      %p59 = scmp.ne.s32.totalorder %s45, %s46
      %p60 = scmp.eq.s32.totalorder %s19, 1
      %p61 = por %p59, %p60
      %p63 = scmp.ne.s32.totalorder %s46, %s62
      %p64 = scmp.eq.s32.totalorder %s19, 0
      %p65 = por %p63, %p64
      %s66 = ssub.s32 %s22, %s31
      %p67 = scmp.eq.s32.totalorder %s66, 0
      %s69 = sadd.s32 %s68, 1
      %s70 = scalar_select %p67, %s68, %s69
      %p73 = pneg %p67
      %p74 = scmp.eq.s32.totalorder %s13, 1
      %p75 = por %p73, %p74
      %p76 = scmp.ne.s32.totalorder %s68, %s71
      %p77 = scmp.eq.s32.totalorder %s13, 0
      %p78 = por %p76, %p77
      %p79 = scmp.ne.s32.totalorder %s68, %s71
      %p80 = scmp.eq.s32.totalorder %s18, 1
      %p81 = por %p79, %p80
      %p82 = scmp.ne.s32.totalorder %s71, %s72
      %p83 = scmp.eq.s32.totalorder %s18, 0
      %p84 = por %p82, %p83
      %p85 = scmp.ne.s32.totalorder %s71, %s72
      %p86 = scmp.eq.s32.totalorder %s19, 1
      %p87 = por %p85, %p86
      %p89 = scmp.ne.s32.totalorder %s72, %s88
      %p90 = scmp.eq.s32.totalorder %s19, 0
      %p91 = por %p89, %p90
      %s92 = ssub.s32 %s22, %s31
      %p93 = scmp.eq.s32.totalorder %s92, 0
      %s95 = sadd.s32 %s94, 1
      %s96 = scalar_select %p93, %s94, %s95
      %p99 = pneg %p93
      %p100 = scmp.eq.s32.totalorder %s13, 1
      %p101 = por %p99, %p100
      %p102 = scmp.ne.s32.totalorder %s94, %s97
      %p103 = scmp.eq.s32.totalorder %s13, 0
      %p104 = por %p102, %p103
      %p105 = scmp.ne.s32.totalorder %s94, %s97
      %p106 = scmp.eq.s32.totalorder %s18, 1
      %p107 = por %p105, %p106
      %p108 = scmp.ne.s32.totalorder %s97, %s98
      %p109 = scmp.eq.s32.totalorder %s18, 0
      %p110 = por %p108, %p109
      %p111 = scmp.ne.s32.totalorder %s97, %s98
      %p112 = scmp.eq.s32.totalorder %s19, 1
      %p113 = por %p111, %p112
      %p115 = scmp.ne.s32.totalorder %s98, %s114
      %p116 = scmp.eq.s32.totalorder %s19, 0
      %p117 = por %p115, %p116
      %s118 = ssub.s32 %s22, %s31
      %p119 = scmp.eq.s32.totalorder %s118, 0
      %s121 = sadd.s32 %s120, 1
      %s122 = scalar_select %p119, %s120, %s121
      %p125 = pneg %p119
      %p126 = scmp.eq.s32.totalorder %s13, 1
      %p127 = por %p125, %p126
      %p128 = scmp.ne.s32.totalorder %s120, %s123
      %p129 = scmp.eq.s32.totalorder %s13, 0
      %p130 = por %p128, %p129
      %p131 = scmp.ne.s32.totalorder %s120, %s123
      %p132 = scmp.eq.s32.totalorder %s18, 1
      %p133 = por %p131, %p132
      %p134 = scmp.ne.s32.totalorder %s123, %s124
      %p135 = scmp.eq.s32.totalorder %s18, 0
      %p136 = por %p134, %p135
      %p137 = scmp.ne.s32.totalorder %s123, %s124
      %p138 = scmp.eq.s32.totalorder %s19, 1
      %p139 = por %p137, %p138
      %p141 = scmp.ne.s32.totalorder %s124, %s140
      %p142 = scmp.eq.s32.totalorder %s19, 0
      %p143 = por %p141, %p142
      %s144 = ssub.s32 %s20, %s39
      %s145 = ssub.s32 %s22, %s31
      %s146 = sor.u32 %s144, %s145
      %s147 = ssub.s32 %s21, %s35
      %s148 = sor.u32 %s146, %s147
      %p149 = scmp.eq.s32.totalorder %s148, 0
      %s151 = sadd.s32 %s150, 1
      %s152 = scalar_select %p149, %s150, %s151
      %p155 = pneg %p149
      %p156 = scmp.eq.s32.totalorder %s13, 1
      %p157 = por %p155, %p156
      %p158 = scmp.ne.s32.totalorder %s150, %s153
      %p159 = scmp.eq.s32.totalorder %s13, 0
      %p160 = por %p158, %p159
      %p161 = scmp.ne.s32.totalorder %s150, %s153
      %p162 = scmp.eq.s32.totalorder %s18, 1
      %p163 = por %p161, %p162
      %p164 = scmp.ne.s32.totalorder %s153, %s154
      %p165 = scmp.eq.s32.totalorder %s18, 0
      %p166 = por %p164, %p165
      %p167 = scmp.ne.s32.totalorder %s153, %s154
      %p168 = scmp.eq.s32.totalorder %s19, 1
      %p169 = por %p167, %p168
      %p171 = scmp.ne.s32.totalorder %s154, %s170
      %p172 = scmp.eq.s32.totalorder %s19, 0
      %p173 = por %p171, %p172
      %p174 = scmp.le.s32.totalorder 1, %s13
      %p175 = scmp.lt.s32.totalorder %s13, 3
      %p176 = pnand %p174, %p175
      %p177 = pneg %p176
      // Predicated region
      $region9: #{tpu_custom_call.1} parent=5 // pred_check
        _
      $region10: #{tpu_custom_call.1} parent=5 // pred_check_branch
        %179 = sbr.rel (%p176) target = $region12
      $region11: #{tpu_custom_call.1} parent=5 // pred_region
        %s180 = ssub.s32 %s13, 1
        // Predicated region
        $region13: #{tpu_custom_call.1} parent=11 // pred_check
          %p181 = pneg %p84
        $region14: #{tpu_custom_call.1} parent=11 // pred_check_branch
          %183 = sbr.rel (%p181) target = $region16
        $region15: #{tpu_custom_call.1} parent=11 // pred_region
          %p184 = scmp.lt.s32.totalorder %s25, 0
          %s185 = scalar_select %p184, %s25, 0
          %s186 = smul.addr %s185, 4
          %s187 = scalar_lea.vmem %s1, %s186
        $region16: #{tpu_custom_call.1} parent=11 // pred_fallthru
          _
        // Predicated region
        $region17: #{tpu_custom_call.1} parent=11 // pred_check
          %p188 = pneg %p110
        $region18: #{tpu_custom_call.1} parent=11 // pred_check_branch
          %190 = sbr.rel (%p188) target = $region20
        $region19: #{tpu_custom_call.1} parent=11 // pred_region
          %p191 = scmp.lt.s32.totalorder %s25, 0
          %s192 = scalar_select %p191, %s25, 0
          %s193 = smul.addr %s192, 8
          %s194 = scalar_lea.vmem %s2, %s193
        $region20: #{tpu_custom_call.1} parent=11 // pred_fallthru
          _
        // Predicated region
        $region21: #{tpu_custom_call.1} parent=11 // pred_check
          %p195 = pneg %p136
        $region22: #{tpu_custom_call.1} parent=11 // pred_check_branch
          %197 = sbr.rel (%p195) target = $region24
        $region23: #{tpu_custom_call.1} parent=11 // pred_region
          %p198 = scmp.lt.s32.totalorder %s25, 0
          %s199 = scalar_select %p198, %s25, 0
          %s200 = smul.addr %s199, 8
          %s201 = scalar_lea.vmem %s3, %s200
        $region24: #{tpu_custom_call.1} parent=11 // pred_fallthru
          _
      $region12: #{tpu_custom_call.1} parent=5 // pred_fallthru
        _
      %p202 = scmp.lt.s32.totalorder %s13, 2
      // Predicated region
      $region25: #{tpu_custom_call.1} parent=5 // pred_check
        %p203 = pneg %p202
      $region26: #{tpu_custom_call.1} parent=5 // pred_check_branch
        %205 = sbr.rel (%p203) target = $region28
      $region27: #{tpu_custom_call.1} parent=5 // pred_region
        // Predicated region
        $region29: #{tpu_custom_call.1} parent=27 // pred_check
          %p206 = pneg %p52
        $region30: #{tpu_custom_call.1} parent=27 // pred_check_branch
          %208 = sbr.rel (%p206) target = $region32
        $region31: #{tpu_custom_call.1} parent=27 // pred_region
          %p209 = scmp.lt.s32.totalorder %s20, 1
          %s210 = scalar_select %p209, %s20, 1
          %s211 = smul.addr %s210, 4
          %s212 = scalar_lea.vmem %s0, %s211
        $region32: #{tpu_custom_call.1} parent=27 // pred_fallthru
          _
      $region28: #{tpu_custom_call.1} parent=5 // pred_fallthru
        _
      %p213 = scmp.le.s32.totalorder 1, %s13
      %p214 = scmp.lt.s32.totalorder %s13, 3
      %p215 = pnand %p213, %p214
      %p216 = pneg %p215
      // Predicated region
      $region33: #{tpu_custom_call.1} parent=5 // pred_check
        _
      $region34: #{tpu_custom_call.1} parent=5 // pred_check_branch
        %218 = sbr.rel (%p215) target = $region36
      $region35: #{tpu_custom_call.1} parent=5 // pred_region
        %s219 = ssub.s32 %s13, 1
        %p220 = scmp.lt.s32.totalorder %s23, 1
        %s221 = scalar_select %p220, %s23, 1
        %s222 = smul.addr %s221, 4
        %s223 = scalar_lea.vmem %s0, %s222
        %p224 = pneg %p58
        %p225 = pneg %p55
        %p226 = scmp.lt.s32.totalorder %s25, 0
        %s227 = scalar_select %p226, %s25, 0
        %s228 = smul.addr %s227, 4
        %s229 = scalar_lea.vmem %s1, %s228
        %p230 = pneg %p84
        %p231 = pneg %p81
        %p232 = scmp.lt.s32.totalorder %s25, 0
        %s233 = scalar_select %p232, %s25, 0
        %s234 = smul.addr %s233, 8
        %s235 = scalar_lea.vmem %s2, %s234
        %p236 = pneg %p110
        %p237 = pneg %p107
        %p238 = scmp.lt.s32.totalorder %s25, 0
        %s239 = scalar_select %p238, %s25, 0
        %s240 = smul.addr %s239, 8
        %s241 = scalar_lea.vmem %s3, %s240
        %p242 = pneg %p136
        %p243 = pneg %p133
        %p244 = pneg %p166
        %p245 = pneg %p163
        %s246 = sand.u32 %s153, 1
        %s247 = scalar_lea.sflag [#allocation5], %s246
        %s248 = sand.u32 %s153, 1
        %s249 = smul.addr %s248, 4
        %s250 = scalar_lea.vmem [#allocation4], %s249
        %p251 = scmp.lt.s32.totalorder %s23, 1
        %s252 = scalar_select %p251, %s23, 1
        %s253 = smul.addr %s252, 4
        %s254 = scalar_lea.vmem %s0, %s253
        %p255 = scmp.lt.s32.totalorder %s25, 0
        %s256 = scalar_select %p255, %s25, 0
        %s257 = smul.addr %s256, 4
        %s258 = scalar_lea.vmem %s1, %s257
        %p259 = scmp.lt.s32.totalorder %s25, 0
        %s260 = scalar_select %p259, %s25, 0
        %s261 = smul.addr %s260, 8
        %s262 = scalar_lea.vmem %s2, %s261
        %p263 = scmp.lt.s32.totalorder %s25, 0
        %s264 = scalar_select %p263, %s25, 0
        %s265 = smul.addr %s264, 8
        %s266 = scalar_lea.vmem %s3, %s265
        %p268 = scmp.eq.s32.totalorder %s24, 0
        %p269 = scmp.eq.s32.totalorder %s25, 0
        %p270 = pnand %p268, %p269
        %p271 = pneg %p270
        // Predicated region
        $region37: #{tpu_custom_call.1} parent=35 // pred_check
          _
        $region38: #{tpu_custom_call.1} parent=35 // pred_check_branch
          %273 = sbr.rel (%p270) target = $region40
        $region39: #{tpu_custom_call.1} parent=35 // pred_region
          %vm274 = vcmask 1024
          %275 = vst.msk [vmem:[#allocation2] sm:$0x3] %vm274, 0
          %vm276 = vcmask 140424
          %277 = vst.msk [vmem:[#allocation2] sm:$0x3] %vm276, 0
          %v278 = vld [vmem:[%s254] sm:$0xf]
          %v279 = vpack.c.bf16 %v278, %v278
          %v282 = vunpack.c.l.s4 1983009808
          %v283 = vunpack.c.0.s8 %v282
          %v284 = vlaneseq
          %v285 = vshrl.u32 %v284, 7
          %v286 = vsub.s32 %v283, %v285
          %v287 = vrot.slane %v279, %v286
          %288 = vrot.lane.b32.xlu0 %v287, 1
          %v289 = vpop.permute.xlu0 %288
          %vm291 = vcmask 132104
          %292 = vst.msk [vmem:[#allocation2] sm:$0x3] %vm291, %v289
        $region40: #{tpu_custom_call.1} parent=35 // pred_fallthru
          _
        // Predicated region
        $region41: #{tpu_custom_call.1} parent=35 // pred_check
          %p293 = pneg %p269
        $region42: #{tpu_custom_call.1} parent=35 // pred_check_branch
          %295 = sbr.rel (%p293) target = $region44
        $region43: #{tpu_custom_call.1} parent=35 // pred_region
          %v296 = vld [vmem:[#allocation2] sm:$0x3]
          %vm297 = vcmask 123904
          %298 = vst.msk [vmem:[#allocation3] sm:$0x3] %vm297, %v296
          %v299 = vld [vmem:[#allocation2] sm:$0x3]
          %v301 = vcombine.low %v299, %v299
          %v303 = vunpack.c.l.s4 1983009808
          %v304 = vunpack.c.0.s8 %v303
          %v305 = vlaneseq
          %v306 = vshrl.u32 %v305, 7
          %v307 = vsub.s32 %v304, %v306
          %v308 = vrot.slane %v301, %v307
          %309 = vrot.lane.b32.xlu0 %v308, 127
          %v310 = vpop.permute.xlu0 %309
          %vm312 = vcmask 125954
          %313 = vst.msk [vmem:[#allocation3] sm:$0xc] %vm312, %v310
          %v314 = vld [vmem:[#allocation2] sm:$0x3]
          %v317 = vunpack.c.l.s4 1983009808
          %v318 = vunpack.c.0.s8 %v317
          %v319 = vlaneseq
          %v320 = vshrl.u32 %v319, 7
          %v321 = vsub.s32 %v318, %v320
          %v322 = vrot.slane %v314, %v321
          %323 = vrot.lane.b32.xlu0 %v322, 126
          %v324 = vpop.permute.xlu0 %323
          %326 = vst.msk [vmem:[#allocation3 + $0x4] sm:$0x3] %vm297, %v324
        $region44: #{tpu_custom_call.1} parent=35 // pred_fallthru
          _
        %v327 = vld [vmem:[%s258] sm:$0xf]
        %v328 = vld [vmem:[#allocation3] sm:$0xf]
        %v329 = vld [vmem:[#allocation3 + $0x4] sm:$0x3]
        %v332 = vunpack.c.l.b16 %v328
        %v333 = vunpack.c.l.b16 %v329
        %v334 = vpack.c.b16 %v333, %v332
        %vm335 = vcmask 97280
        %v337 = vsel %vm335, %v327, 0
        %vm339 = vcmask 1045504
        %v341 = vsel %vm339, %v334, 0
        %343 = vmatprep.subr.bf16.mxu0 0
        %344 = vmatpush1.bf16.msra.mxu0 %v341
        %345 = vmatprep.subr.bf16.mxu0 0
        %346 = vmatpush1.bf16.msra.mxu0 0
        %347 = vmatprep.subr.bf16.mxu0 0
        %348 = vmatpush1.bf16.msra.mxu0 0
        %349 = vmatprep.subr.bf16.mxu0 0
        %350 = vmatpush1.bf16.msra.mxu0 0
        %351 = vmatprep.subr.bf16.mxu0 0
        %352 = vmatpush1.bf16.msra.mxu0 0
        %353 = vmatprep.subr.bf16.mxu0 0
        %354 = vmatpush1.bf16.msra.mxu0 0
        %355 = vmatprep.subr.bf16.mxu0 0
        %356 = vmatpush1.bf16.msra.mxu0 0
        %357 = vmatprep.subr.bf16.mxu0 0
        %358 = vmatpush1.bf16.msra.mxu0 0
        %359 = vmatprep.subr.bf16.mxu0 0
        %360 = vmatpush1.bf16.msra.mxu0 0
        %361 = vmatprep.subr.bf16.mxu0 0
        %362 = vmatpush1.bf16.msra.mxu0 0
        %363 = vmatprep.subr.bf16.mxu0 0
        %364 = vmatpush1.bf16.msra.mxu0 0
        %365 = vmatprep.subr.bf16.mxu0 0
        %366 = vmatpush1.bf16.msra.mxu0 0
        %367 = vmatprep.subr.bf16.mxu0 0
        %368 = vmatpush1.bf16.msra.mxu0 0
        %369 = vmatprep.subr.bf16.mxu0 0
        %370 = vmatpush1.bf16.msra.mxu0 0
        %371 = vmatprep.subr.bf16.mxu0 0
        %372 = vmatpush1.bf16.msra.mxu0 0
        %373 = vmatprep.subr.bf16.mxu0 0
        %374 = vmatpush1.bf16.msra.mxu0 0
        %375 = vmatprep.mubr.bf16.mxu0 0
        %376 = vmatmul.mubr.bf16.gmra.mrb[0].mxu0 %v337
        %v377 = vpop.f32.mrb[0].mxu0
        %v378 = vadd.f32 0.0, %v377
        %v379 = vpop.f32.mrb[0].mxu0
        %v380 = vpop.f32.mrb[0].mxu0
        %v381 = vpop.f32.mrb[0].mxu0
        %382 = vdwg.mxu0
        %v383 = vld [vmem:[%s262] sm:$0xff]
        %385 = vset.pattern.permute.xlu0 0
        %386 = vperm.xlu0 %385, %v383
        %v387 = vpop.permute.xlu0 %386
        %v389 = vmul.f32 %v378, %v387
        %v390 = vld [vmem:[%s266] sm:$0xff]
        %392 = vset.pattern.permute.xlu0 0
        %393 = vperm.xlu0 %392, %v390
        %v394 = vpop.permute.xlu0 %393
        %v396 = vadd.f32 %v389, %v394
        %v397 = vmax.f32 %v396, 0.0
        %v398 = vpack.c.bf16 %v397, %v397
        %vm399 = vcmask 125952
        %400 = vst.msk [vmem:[%s250] sm:$0xf] %vm399, %v398
        %s401 = sand.u32 %s153, 1
        %s402 = scalar_lea.sflag [#allocation5], %s401
        %s403 = sand.u32 %s153, 1
        %s404 = smul.addr %s403, 4
        %s405 = scalar_lea.vmem [#allocation4], %s404
        // Predicated region
        $region45: #{tpu_custom_call.1} parent=35 // pred_check
          %p406 = pneg %p163
        $region46: #{tpu_custom_call.1} parent=35 // pred_check_branch
          %408 = sbr.rel (%p406) target = $region48
        $region47: #{tpu_custom_call.1} parent=35 // pred_region
          %s410 = ssub.s32 64, 64
          %411 = vsyncadd %s402, %s410
          %s412 = sadd.s32 %s24, %s25
          %s413 = sadd.s32 %s412, %s23
          %s414 = smul.addr %s413, 64
          %s415 = scalar_lea.hbm %s4, %s414
          %s417 = sshll.u32 %s405, 4
          %s418 = int_to_ptr.vmem [resolvable:$true] %s417
          %420 = dma.vmem_to_hbm [thread:$0]  %s418, 64, %s415, %s402
        $region48: #{tpu_custom_call.1} parent=35 // pred_fallthru
          _
      $region36: #{tpu_custom_call.1} parent=5 // pred_fallthru
        _
      %p421 = scmp.le.s32.totalorder 2, %s13
      // Predicated region
      $region49: #{tpu_custom_call.1} parent=5 // pred_check
        %p422 = pneg %p421
      $region50: #{tpu_custom_call.1} parent=5 // pred_check_branch
        %424 = sbr.rel (%p422) target = $region52
      $region51: #{tpu_custom_call.1} parent=5 // pred_region
        %s425 = ssub.s32 %s13, 2
        // Predicated region
        $region53: #{tpu_custom_call.1} parent=51 // pred_check
          %p426 = pneg %p169
        $region54: #{tpu_custom_call.1} parent=51 // pred_check_branch
          %428 = sbr.rel (%p426) target = $region56
        $region55: #{tpu_custom_call.1} parent=51 // pred_region
          %s429 = sand.u32 %s154, 1
          %s430 = scalar_lea.sflag [#allocation5], %s429
          %s431 = sand.u32 %s154, 1
          %s432 = smul.addr %s431, 4
          %s433 = scalar_lea.vmem [#allocation4], %s432
          %434 = dma.done %s430, 64
        $region56: #{tpu_custom_call.1} parent=51 // pred_fallthru
          _
      $region52: #{tpu_custom_call.1} parent=5 // pred_fallthru
        _
    $region6: #{tpu_custom_call.1} parent=1 // loop_footer
      %s17 = sadd.s32 1, %s13
    $region7: #{tpu_custom_call.1} parent=1 // loop_footer_branch
      %12 = sbr.rel target = $region3
    $region8: #{tpu_custom_call.1} parent=1 // loop_exit
      _
    %435 = vsyncpa [#allocation5], 1
    %s436 = scalar_lea.sflag [#allocation5], 1
    %437 = vsyncpa %s436, 1

</llo_original>
